<compile_context>
chip_gen: v5e
topology: v5e:2x2
jax: 0.10.0
libtpu: 0.0.40
codegen_flags: <defaults>
</compile_context>

<pallas_src>
from random import random

import jax
import jax.numpy as jnp
from jax.experimental import pallas as pl
from jax.experimental.pallas import tpu as pltpu


def _round_up(n, m):
    return ((n + m - 1) // m) * m


# ----------------------------------------------------------------------------
# Pallas kernel: K-tiled fused MLP discriminator
#   out = relu(x @ W1 + b1) @ W2 + b2
# Grid = (batch tiles [parallel], K tiles [arbitrary, reduction axis last]).
# ----------------------------------------------------------------------------
def _disc_kernel(x_ref, w1_ref, b1_ref, w2t_ref, b2_ref, o_ref, acc_ref):
    k = pl.program_id(1)

    @pl.when(k == 0)
    def _init():
        acc_ref[...] = jnp.zeros_like(acc_ref)

    # bf16 x bf16 MXU matmul with f32 accumulation.
    acc_ref[...] += jnp.dot(x_ref[...], w1_ref[...],
                            preferred_element_type=jnp.float32)

    @pl.when(k == pl.num_programs(1) - 1)
    def _finalize():
        # Post-matmul elementwise kept in f32 (v5e VPU/EUP have no bf16 path).
        h = jnp.maximum(acc_ref[...] + b1_ref[...], 0.0)            # (TB, Hd)
        # Second layer (Hd -> 1) as a VPU broadcast-multiply + lane reduction
        # instead of an N=1 MXU pass with a (Hd, 1) weight tile.
        logit = jnp.sum(h * w2t_ref[...], axis=-1, keepdims=True)   # (TB, 1)
        logit = logit + b2_ref[...]
        # Lane-dense 128-wide output slab -> unmasked stores; wrapper slices
        # back to (B, 1).
        o_ref[...] = jnp.broadcast_to(logit, o_ref.shape).astype(o_ref.dtype)


def _pick_tk(f_pad, hd_pad, tb, vmem_budget_bytes):
    """Largest 128-multiple K tile dividing f_pad that fits the VMEM budget,
    capped so the reduction axis keeps >= ~4 pipeline steps."""
    cap = max(128, (f_pad // 4) // 128 * 128)
    best = 128
    tk = 128
    while tk <= cap:
        if f_pad % tk == 0:
            need = (2 * (tb * tk * 2 + tk * hd_pad * 2)   # double-buffered bf16 x, W1
                    + tb * hd_pad * 4                     # f32 accumulator
                    + 2 * tb * 128 * 4                    # output slab buffers
                    + 2 * hd_pad * 4 + 4)                 # b1, w2^T, b2
            if need <= vmem_budget_bytes:
                best = tk
        tk += 128
    return best


def discriminator_pallas(x_pad, w1_pad, b1, w2t, b2):
    """x_pad: (Bp, Fp) bf16; w1_pad: (Fp, Hdp) bf16; b1/w2t: (1, Hdp) f32;
    b2: (1, 1) f32.  Returns (Bp, 128) f32 slab with the logit broadcast
    across lanes."""
    bp, fp = x_pad.shape
    hdp = w1_pad.shape[1]

    tb = bp if bp <= 128 else 128   # TODO(synk): prefer 256-row M tiles on v6e.
    # Conservative budget: safe under v5e's 16 MiB scoped default and v7x's
    # 64 MiB physical VMEM, while leaving headroom for double-buffering.
    tk = _pick_tk(fp, hdp, tb, vmem_budget_bytes=8 * 1024 * 1024)

    grid = (bp // tb, fp // tk)

    flops = 2 * bp * fp * hdp + 4 * bp * hdp
    bytes_accessed = (bp * fp * 2 + fp * hdp * 2       # bf16 activations + W1
                      + 2 * hdp * 4 + 4                # b1, w2^T, b2
                      + bp * 128 * 4)                  # output slab

    return pl.pallas_call(
        _disc_kernel,
        out_shape=jax.ShapeDtypeStruct((bp, 128), jnp.float32),
        grid_spec=pltpu.PrefetchScalarGridSpec(
            num_scalar_prefetch=0,
            grid=grid,
            in_specs=[
                pl.BlockSpec((tb, tk), lambda b, k: (b, k)),    # x tile
                # W1 stream (dominant HBM traffic, double-buffered by Pallas).
                # NOTE: pipeline_mode=pl.Buffered(3) is a worthwhile knob on
                # v6e once the K depth is large; left at default depth here.
                pl.BlockSpec((tk, hdp), lambda b, k: (k, 0)),   # W1 tile
                pl.BlockSpec((1, hdp), lambda b, k: (0, 0)),    # b1
                pl.BlockSpec((1, hdp), lambda b, k: (0, 0)),    # w2^T
                pl.BlockSpec((1, 1), lambda b, k: (0, 0)),      # b2
            ],
            out_specs=pl.BlockSpec((tb, 128), lambda b, k: (b, 0)),
            scratch_shapes=[pltpu.VMEM((tb, hdp), jnp.float32)],
        ),
        compiler_params=pltpu.CompilerParams(
            dimension_semantics=("parallel", "arbitrary"),
            vmem_limit_bytes=32 * 1024 * 1024,
        ),
        cost_estimate=pl.CostEstimate(
            flops=flops, transcendentals=0, bytes_accessed=bytes_accessed),
    )(x_pad, w1_pad, b1, w2t, b2)


# ----------------------------------------------------------------------------
# Synthetic discriminator D (deterministic weights), calling the Pallas kernel.
# ----------------------------------------------------------------------------
class Discriminator:
    """Flatten -> Linear(F, hidden) -> ReLU -> Linear(hidden, 1)."""

    def __init__(self, image_size, channels, hidden=128, key=None):
        key = jax.random.PRNGKey(42) if key is None else key
        k1, k2 = jax.random.split(key)
        f = channels * image_size * image_size
        self.f = f
        self.hidden = hidden
        self.f_pad = _round_up(f, 128)
        self.hd_pad = _round_up(hidden, 128)

        w1 = jax.random.normal(k1, (f, hidden), jnp.float32) / jnp.sqrt(f)
        w2 = jax.random.normal(k2, (hidden, 1), jnp.float32) / jnp.sqrt(hidden)

        # Kernel-side parameters: W1 in bf16 (halves the dominant HBM stream),
        # zero-padded to (f_pad, hd_pad); second layer kept as a (1, hd_pad)
        # f32 row for the in-kernel VPU reduction.
        self.w1_bf16 = jnp.zeros((self.f_pad, self.hd_pad), jnp.bfloat16)
        self.w1_bf16 = self.w1_bf16.at[:f, :hidden].set(w1.astype(jnp.bfloat16))
        self.b1 = jnp.zeros((1, self.hd_pad), jnp.float32)
        self.w2t = jnp.zeros((1, self.hd_pad), jnp.float32)
        self.w2t = self.w2t.at[0, :hidden].set(w2[:, 0])
        self.b2 = jnp.zeros((1, 1), jnp.float32)

    def _prep(self, images):
        b = images.shape[0]
        # Single flatten + cast straight to bf16 (no extra f32 copy of the
        # activations in HBM before the kernel reads them).
        x = images.reshape(b, -1).astype(jnp.bfloat16)
        bp = _round_up(b, 16) if b <= 128 else _round_up(b, 128)
        x = jnp.pad(x, ((0, bp - b), (0, self.f_pad - self.f)))
        return x, b

    def __call__(self, images):                         # images: (B, C, H, W)
        x_pad, b = self._prep(images)
        out = discriminator_pallas(x_pad, self.w1_bf16, self.b1, self.w2t,
                                   self.b2)
        return out[:b, :1]

    def reference(self, images):
        # Pure-JAX reference matching the kernel numerics (bf16 inputs,
        # f32 accumulation).
        b = images.shape[0]
        x = images.reshape(b, -1).astype(jnp.bfloat16)
        w1 = self.w1_bf16[:self.f, :self.hidden]
        h = jnp.dot(x, w1, preferred_element_type=jnp.float32)
        h = jnp.maximum(h + self.b1[:, :self.hidden], 0.0)
        out = jnp.sum(h * self.w2t[:, :self.hidden], axis=-1, keepdims=True)
        return out + self.b2


# ----------------------------------------------------------------------------
# AugWrapper (host-side branching mirrors PyTorch's use of python random()).
# ----------------------------------------------------------------------------
def random_hflip(tensor, prob):
    if prob > random():
        return tensor
    return jnp.flip(tensor, axis=3)              # dims=(3,) == width in NCHW


class AugWrapper:
    def __init__(self, D, image_size):
        self.D = D

    def __call__(self, images, prob=0.0, types=(), detach=False):
        # NOTE: augmentation decision uses Python random() exactly like the
        # PyTorch module; if this call is jit-wrapped the decision is baked
        # into the trace.
        if random() < prob:
            images = random_hflip(images, prob=0.5)
            # TODO(synk): DiffAugment policies (color/translation/cutout) not
            # ported; DiffAugment(images, types=[]) is the identity.
        if detach:
            images = jax.lax.stop_gradient(images)
        # TODO(synk): forward-only; backprop through the Pallas kernel needs
        # an explicit custom_vjp / backward kernel.
        return self.D(images)


# ----------------------------------------------------------------------------
if __name__ == "__main__":
    B, C, H, W = 2, 4, 16, 16
    key = jax.random.PRNGKey(0)
    images = jax.random.normal(key, (B, C, H, W), jnp.float32)

    D = Discriminator(image_size=H, channels=C, hidden=128)
    wrapper = AugWrapper(D, image_size=H)

    out = wrapper(images, prob=0.0, types=[], detach=False)
    out = jax.block_until_ready(out)

    ref = D.reference(images)
    assert out.shape == (B, 1)
    assert jnp.allclose(out, ref, atol=5e-3, rtol=5e-3), (out, ref)
    print("KERNEL_OK")
</pallas_src>

<mosaic_0001>
module attributes {stable_mosaic.version = 11 : i64} {
  func.func @_disc_kernel(%arg0: i32, %arg1: i32, %arg2: memref<16x256xbf16, #tpu.memory_space<vmem>>, %arg3: memref<256x128xbf16, #tpu.memory_space<vmem>>, %arg4: memref<1x128xf32, #tpu.memory_space<vmem>>, %arg5: memref<1x128xf32, #tpu.memory_space<vmem>>, %arg6: memref<1x1xf32, #tpu.memory_space<vmem>>, %arg7: memref<16x128xf32, #tpu.memory_space<vmem>>, %arg8: memref<16x128xf32, #tpu.memory_space<vmem>>) attributes {dimension_semantics = [#tpu.dimension_semantics<parallel>, #tpu.dimension_semantics<arbitrary>], iteration_bounds = array<i64: 1, 4>, scalar_prefetch = 0 : i64, scratch_operands = 1 : i64, tpu.core_type = #tpu.core_type<tc>, window_params = [{transform_indices = @transform_0, window_bounds = array<i64: 16, 256>}, {transform_indices = @transform_1, window_bounds = array<i64: 256, 128>}, {pipeline_mode = #tpu.pipeline_mode<synchronous>, transform_indices = @transform_2, window_bounds = array<i64: 1, 128>}, {pipeline_mode = #tpu.pipeline_mode<synchronous>, transform_indices = @transform_3, window_bounds = array<i64: 1, 128>}, {pipeline_mode = #tpu.pipeline_mode<synchronous>, transform_indices = @transform_4, window_bounds = array<i64: 1, 1>}, {transform_indices = @transform_5, window_bounds = array<i64: 16, 128>}]} {
    %c0_i32 = arith.constant 0 : i32
    %0 = arith.cmpi eq, %arg1, %c0_i32 : i32
    %1 = arith.extui %0 : i1 to i32
    %c0_i32_0 = arith.constant 0 : i32
    %2 = arith.cmpi ne, %1, %c0_i32_0 : i32
    scf.if %2 {
      %cst_9 = arith.constant 0.000000e+00 : f32
      %12 = vector.broadcast %cst_9 : f32 to vector<16x128xf32>
      %c0_10 = arith.constant 0 : index
      %c0_11 = arith.constant 0 : index
      %13 = vector.load %arg8[%c0_10, %c0_11] : memref<16x128xf32, #tpu.memory_space<vmem>>, vector<16x128xf32>
      tpu.vector_store %arg8[%c0_10, %c0_11], %12 {strides = array<i32>} : memref<16x128xf32, #tpu.memory_space<vmem>>, vector<16x128xf32>,
    } else {
    }
    %c0 = arith.constant 0 : index
    %c0_1 = arith.constant 0 : index
    %3 = vector.load %arg8[%c0, %c0_1] : memref<16x128xf32, #tpu.memory_space<vmem>>, vector<16x128xf32>
    %c0_2 = arith.constant 0 : index
    %c0_3 = arith.constant 0 : index
    %4 = vector.load %arg2[%c0_2, %c0_3] : memref<16x256xbf16, #tpu.memory_space<vmem>>, vector<16x256xbf16>
    %c0_4 = arith.constant 0 : index
    %c0_5 = arith.constant 0 : index
    %5 = vector.load %arg3[%c0_4, %c0_5] : memref<256x128xbf16, #tpu.memory_space<vmem>>, vector<256x128xbf16>
    %cst = arith.constant dense<0.000000e+00> : vector<16x128xf32>
    %6 = tpu.matmul %4, %5, %cst {dimension_numbers = #tpu.dot_dimension_numbers<[1], [0], [0], [1], [0, 0, 1, 1], [], []>} : vector<16x256xbf16>, vector<256x128xbf16>, vector<16x128xf32> -> vector<16x128xf32>
    %7 = arith.addf %3, %6 : vector<16x128xf32>
    %c0_6 = arith.constant 0 : index
    %c0_7 = arith.constant 0 : index
    %8 = vector.load %arg8[%c0_6, %c0_7] : memref<16x128xf32, #tpu.memory_space<vmem>>, vector<16x128xf32>
    tpu.vector_store %arg8[%c0_6, %c0_7], %7 {strides = array<i32>} : memref<16x128xf32, #tpu.memory_space<vmem>>, vector<16x128xf32>,
    %c3_i32 = arith.constant 3 : i32
    %9 = arith.cmpi eq, %arg1, %c3_i32 : i32
    %10 = arith.extui %9 : i1 to i32
    %c0_i32_8 = arith.constant 0 : i32
    %11 = arith.cmpi ne, %10, %c0_i32_8 : i32
    scf.if %11 {
      %c0_9 = arith.constant 0 : index
      %c0_10 = arith.constant 0 : index
      %12 = vector.load %arg8[%c0_9, %c0_10] : memref<16x128xf32, #tpu.memory_space<vmem>>, vector<16x128xf32>
      %c0_11 = arith.constant 0 : index
      %c0_12 = arith.constant 0 : index
      %13 = vector.load %arg4[%c0_11, %c0_12] : memref<1x128xf32, #tpu.memory_space<vmem>>, vector<1x128xf32>
      %14 = vector.broadcast %13 : vector<1x128xf32> to vector<16x128xf32>
      %15 = arith.addf %12, %14 : vector<16x128xf32>
      %cst_13 = arith.constant 0.000000e+00 : f32
      %16 = vector.broadcast %cst_13 : f32 to vector<16x128xf32>
      %17 = arith.maximumf %15, %16 : vector<16x128xf32>
      %c0_14 = arith.constant 0 : index
      %c0_15 = arith.constant 0 : index
      %18 = vector.load %arg5[%c0_14, %c0_15] : memref<1x128xf32, #tpu.memory_space<vmem>>, vector<1x128xf32>
      %19 = vector.broadcast %18 : vector<1x128xf32> to vector<16x128xf32>
      %20 = arith.mulf %17, %19 : vector<16x128xf32>
      %cst_16 = arith.constant dense<0.000000e+00> : vector<16xf32>
      %21 = vector.multi_reduction <add>, %20, %cst_16 [1] : vector<16x128xf32> to vector<16xf32>
      %22 = vector.shape_cast %21 : vector<16xf32> to vector<16x1xf32>
      %c0_17 = arith.constant 0 : index
      %c0_18 = arith.constant 0 : index
      %23 = vector.load %arg6[%c0_17, %c0_18] : memref<1x1xf32, #tpu.memory_space<vmem>>, vector<1x1xf32>
      %24 = vector.broadcast %23 : vector<1x1xf32> to vector<16x1xf32>
      %25 = arith.addf %22, %24 : vector<16x1xf32>
      %26 = vector.shape_cast %25 : vector<16x1xf32> to vector<16x1xf32>
      %27 = vector.broadcast %26 : vector<16x1xf32> to vector<16x128xf32>
      %c0_19 = arith.constant 0 : index
      %c0_20 = arith.constant 0 : index
      %28 = vector.load %arg7[%c0_19, %c0_20] : memref<16x128xf32, #tpu.memory_space<vmem>>, vector<16x128xf32>
      tpu.vector_store %arg7[%c0_19, %c0_20], %27 {strides = array<i32>} : memref<16x128xf32, #tpu.memory_space<vmem>>, vector<16x128xf32>,
    } else {
    }
    return
  }
  func.func @transform_0(%arg0: i32, %arg1: i32) -> (i32, i32) {
    %c0_i32 = arith.constant 0 : i32
    return %arg0, %arg1 : i32, i32
  }
  func.func @transform_1(%arg0: i32, %arg1: i32) -> (i32, i32) {
    %c0_i32 = arith.constant 0 : i32
    %c0_i32_0 = arith.constant 0 : i32
    return %arg1, %c0_i32 : i32, i32
  }
  func.func @transform_2(%arg0: i32, %arg1: i32) -> (i32, i32) {
    %c0_i32 = arith.constant 0 : i32
    %c0_i32_0 = arith.constant 0 : i32
    %c0_i32_1 = arith.constant 0 : i32
    return %c0_i32, %c0_i32_0 : i32, i32
  }
  func.func @transform_3(%arg0: i32, %arg1: i32) -> (i32, i32) {
    %c0_i32 = arith.constant 0 : i32
    %c0_i32_0 = arith.constant 0 : i32
    %c0_i32_1 = arith.constant 0 : i32
    return %c0_i32, %c0_i32_0 : i32, i32
  }
  func.func @transform_4(%arg0: i32, %arg1: i32) -> (i32, i32) {
    %c0_i32 = arith.constant 0 : i32
    %c0_i32_0 = arith.constant 0 : i32
    %c0_i32_1 = arith.constant 0 : i32
    return %c0_i32, %c0_i32_0 : i32, i32
  }
  func.func @transform_5(%arg0: i32, %arg1: i32) -> (i32, i32) {
    %c0_i32 = arith.constant 0 : i32
    %c0_i32_0 = arith.constant 0 : i32
    return %arg0, %c0_i32 : i32, i32
  }
}

</mosaic_0001>

<llo_original>
// kernel: tpu_custom_call.1
$region0: #{tpu_custom_call.1}
  #allocation0 [shape = 'u32[]', space=smem, size = 0x4, offset = 0x4, fixed_abs, tag = 'smem constant byte address 0x4 - core index']
  #allocation1 [shape = 'u32[72,128]{1,0:T(1,128)}', space=vmem, size = 0x9000, scoped, tag = 'internal scratch']
  #allocation2 [shape = 'f32[16,128]{1,0:T(8,128)}', space=vmem, size = 0x2000, scoped, tag = 'scratch operand']
  #allocation3 [shape = 'f32[1,1]{1,0:T(1,128)S(1)}', space=vmem, size = 0x200, scoped, tag = 'scoped memory for tpu_custom_call.1']
  %s0 = inlined_call_operand.hbm [shape: bf16[16,1024], index: 0, kind: input, shape index: {}]
  %s1 = inlined_call_operand.hbm [shape: bf16[1024,128], index: 1, kind: input, shape index: {}]
  %s2 = inlined_call_operand.vmem [shape: f32[1,128], index: 2, kind: input, shape index: {}]
  %s3 = inlined_call_operand.vmem [shape: f32[1,128], index: 3, kind: input, shape index: {}]
  %s4 = inlined_call_operand.<no memory space> [shape: f32[1,1], index: 4, kind: input, shape index: {}]
  %s5 = inlined_call_operand.hbm [shape: f32[16,128], index: 5, kind: output, shape index: {}]
  %s6 = sld [smem:[#allocation0]]
  $region69: #{tpu_custom_call.1} parent=0
    _
  %s8 = ssub.s32 1, %s6
  %s9 = scalar_select 0, %s8, %s6
  %v10 = vstv %s4
  %11 = vst [vmem:[#allocation3] sm:$0x1] %v10
  $region1: #{tpu_custom_call.1} parent=0
    #allocation4 [shape = 'u8[16384]{0}', space=vmem, size = 0x4000, scoped, tag = 'input window, operand 0']
    #allocation5 [shape = 's32[2]{0}', space=sflag, size = 0x8, scoped, tag = 'scoped memory for tpu_custom_call.1']
    #allocation6 [shape = 's32[2]{0}', space=sflag, size = 0x8, scoped, tag = 'scoped memory for tpu_custom_call.1']
    #allocation7 [shape = 'u8[131072]{0}', space=vmem, size = 0x20000, scoped, tag = 'input window, operand 1']
    #allocation8 [shape = 's32[2]{0}', space=sflag, size = 0x8, scoped, tag = 'scoped memory for tpu_custom_call.1']
    #allocation9 [shape = 'u8[8192]{0}', space=vmem, size = 0x2000, scoped, tag = 'output window, operand 0, single buffered']
    %12 = vsyncpa [#allocation5], 0
    %s13 = scalar_lea.sflag [#allocation5], 1
    %14 = vsyncpa %s13, 0
    %15 = vsyncpa [#allocation8], 0
    %s16 = scalar_lea.sflag [#allocation8], 1
    %17 = vsyncpa %s16, 0
    %18 = vsyncpa [#allocation6], 0
    loop: start=0, step=1, limit=6
    $region2: #{tpu_custom_call.1} parent=1 // loop_pre_header
      _
    $region3: #{tpu_custom_call.1} parent=1 // loop_header
      %s20 = sphi 0, %s24
      %p21 = scmp.ge.s32.totalorder %s20, 6
      %s27 = sphi 0, %s39
      %s28 = sphi 0, %s35
      %s29 = sphi 0, %s27
      %s30 = sphi 0, %s28
      %s31 = sphi 0, %s29
      %s32 = sphi 0, %s30
      %s44 = sphi 0, %s46
      %s47 = sphi 0, %s44
      %s48 = sphi 0, %s47
      %s64 = sphi 0, %s48
      %s70 = sphi 0, %s72
      %s73 = sphi 0, %s70
      %s74 = sphi 0, %s73
      %s90 = sphi 0, %s74
      %s94 = sphi 0, %s94
      %s96 = sphi 0, %s94
      %s97 = sphi 0, %s96
      %s111 = sphi 0, %s97
      %s115 = sphi 0, %s115
      %s117 = sphi 0, %s115
      %s118 = sphi 0, %s117
      %s132 = sphi 0, %s118
      %s136 = sphi 0, %s136
      %s138 = sphi 0, %s136
      %s139 = sphi 0, %s138
      %s153 = sphi 0, %s139
      %s159 = sphi 0, %s161
      %s162 = sphi 0, %s159
      %s163 = sphi 0, %s162
      %s179 = sphi 0, %s163
    $region4: #{tpu_custom_call.1} parent=1 // loop_header_branch
      %23 = sbr.rel (%p21) target = $region8
    $region5: #{tpu_custom_call.1} parent=1 // loop_body
      %s25 = ssub.s32 %s20, 1
      %s26 = ssub.s32 %s20, 2
      %s33 = sadd.s32 1, %s28
      %p34 = scmp.ge.s32.totalorder %s33, 4
      %s35 = scalar_select %p34, 0, %s33
      %s36 = sadd.s32 1, %s27
      %s37 = scalar_select %p34, %s36, %s27
      %p38 = scmp.ge.s32.totalorder %s37, 1
      %s39 = scalar_select %p38, 0, %s37
      %s40 = ssub.s32 %s27, %s39
      %s41 = ssub.s32 %s28, %s35
      %s42 = sor.u32 %s40, %s41
      %p43 = scmp.eq.s32.totalorder %s42, 0
      %s45 = sadd.s32 %s44, 1
      %s46 = scalar_select %p43, %s44, %s45
      %p49 = pneg %p43
      %p50 = scmp.eq.s32.totalorder %s20, 3
      %p51 = por %p49, %p50
      %p52 = scmp.ne.s32.totalorder %s44, %s47
      %p53 = scmp.eq.s32.totalorder %s20, 0
      %p54 = por %p52, %p53
      %p55 = scmp.ne.s32.totalorder %s44, %s47
      %p56 = scmp.eq.s32.totalorder %s25, 3
      %p57 = por %p55, %p56
      %p58 = scmp.ne.s32.totalorder %s47, %s48
      %p59 = scmp.eq.s32.totalorder %s25, 0
      %p60 = por %p58, %p59
      %p61 = scmp.ne.s32.totalorder %s47, %s48
      %p62 = scmp.eq.s32.totalorder %s26, 3
      %p63 = por %p61, %p62
      %p65 = scmp.ne.s32.totalorder %s48, %s64
      %p66 = scmp.eq.s32.totalorder %s26, 0
      %p67 = por %p65, %p66
      %s68 = ssub.s32 %s28, %s35
      %p69 = scmp.eq.s32.totalorder %s68, 0
      %s71 = sadd.s32 %s70, 1
      %s72 = scalar_select %p69, %s70, %s71
      %p75 = pneg %p69
      %p76 = scmp.eq.s32.totalorder %s20, 3
      %p77 = por %p75, %p76
      %p78 = scmp.ne.s32.totalorder %s70, %s73
      %p79 = scmp.eq.s32.totalorder %s20, 0
      %p80 = por %p78, %p79
      %p81 = scmp.ne.s32.totalorder %s70, %s73
      %p82 = scmp.eq.s32.totalorder %s25, 3
      %p83 = por %p81, %p82
      %p84 = scmp.ne.s32.totalorder %s73, %s74
      %p85 = scmp.eq.s32.totalorder %s25, 0
      %p86 = por %p84, %p85
      %p87 = scmp.ne.s32.totalorder %s73, %s74
      %p88 = scmp.eq.s32.totalorder %s26, 3
      %p89 = por %p87, %p88
      %p91 = scmp.ne.s32.totalorder %s74, %s90
      %p92 = scmp.eq.s32.totalorder %s26, 0
      %p93 = por %p91, %p92
      %s95 = sadd.s32 %s94, 1
      %p98 = scmp.eq.s32.totalorder %s20, 3
      %p99 = scmp.ne.s32.totalorder %s94, %s96
      %p100 = scmp.eq.s32.totalorder %s20, 0
      %p101 = por %p99, %p100
      %p102 = scmp.ne.s32.totalorder %s94, %s96
      %p103 = scmp.eq.s32.totalorder %s25, 3
      %p104 = por %p102, %p103
      %p105 = scmp.ne.s32.totalorder %s96, %s97
      %p106 = scmp.eq.s32.totalorder %s25, 0
      %p107 = por %p105, %p106
      %p108 = scmp.ne.s32.totalorder %s96, %s97
      %p109 = scmp.eq.s32.totalorder %s26, 3
      %p110 = por %p108, %p109
      %p112 = scmp.ne.s32.totalorder %s97, %s111
      %p113 = scmp.eq.s32.totalorder %s26, 0
      %p114 = por %p112, %p113
      %s116 = sadd.s32 %s115, 1
      %p119 = scmp.eq.s32.totalorder %s20, 3
      %p120 = scmp.ne.s32.totalorder %s115, %s117
      %p121 = scmp.eq.s32.totalorder %s20, 0
      %p122 = por %p120, %p121
      %p123 = scmp.ne.s32.totalorder %s115, %s117
      %p124 = scmp.eq.s32.totalorder %s25, 3
      %p125 = por %p123, %p124
      %p126 = scmp.ne.s32.totalorder %s117, %s118
      %p127 = scmp.eq.s32.totalorder %s25, 0
      %p128 = por %p126, %p127
      %p129 = scmp.ne.s32.totalorder %s117, %s118
      %p130 = scmp.eq.s32.totalorder %s26, 3
      %p131 = por %p129, %p130
      %p133 = scmp.ne.s32.totalorder %s118, %s132
      %p134 = scmp.eq.s32.totalorder %s26, 0
      %p135 = por %p133, %p134
      %s137 = sadd.s32 %s136, 1
      %p140 = scmp.eq.s32.totalorder %s20, 3
      %p141 = scmp.ne.s32.totalorder %s136, %s138
      %p142 = scmp.eq.s32.totalorder %s20, 0
      %p143 = por %p141, %p142
      %p144 = scmp.ne.s32.totalorder %s136, %s138
      %p145 = scmp.eq.s32.totalorder %s25, 3
      %p146 = por %p144, %p145
      %p147 = scmp.ne.s32.totalorder %s138, %s139
      %p148 = scmp.eq.s32.totalorder %s25, 0
      %p149 = por %p147, %p148
      %p150 = scmp.ne.s32.totalorder %s138, %s139
      %p151 = scmp.eq.s32.totalorder %s26, 3
      %p152 = por %p150, %p151
      %p154 = scmp.ne.s32.totalorder %s139, %s153
      %p155 = scmp.eq.s32.totalorder %s26, 0
      %p156 = por %p154, %p155
      %s157 = ssub.s32 %s27, %s39
      %p158 = scmp.eq.s32.totalorder %s157, 0
      %s160 = sadd.s32 %s159, 1
      %s161 = scalar_select %p158, %s159, %s160
      %p164 = pneg %p158
      %p165 = scmp.eq.s32.totalorder %s20, 3
      %p166 = por %p164, %p165
      %p167 = scmp.ne.s32.totalorder %s159, %s162
      %p168 = scmp.eq.s32.totalorder %s20, 0
      %p169 = por %p167, %p168
      %p170 = scmp.ne.s32.totalorder %s159, %s162
      %p171 = scmp.eq.s32.totalorder %s25, 3
      %p172 = por %p170, %p171
      %p173 = scmp.ne.s32.totalorder %s162, %s163
      %p174 = scmp.eq.s32.totalorder %s25, 0
      %p175 = por %p173, %p174
      %p176 = scmp.ne.s32.totalorder %s162, %s163
      %p177 = scmp.eq.s32.totalorder %s26, 3
      %p178 = por %p176, %p177
      %p180 = scmp.ne.s32.totalorder %s163, %s179
      %p181 = scmp.eq.s32.totalorder %s26, 0
      %p182 = por %p180, %p181
      %p183 = scmp.le.s32.totalorder 1, %s20
      %p184 = scmp.lt.s32.totalorder %s20, 5
      %p185 = pnand %p183, %p184
      %p186 = pneg %p185
      // Predicated region
      $region9: #{tpu_custom_call.1} parent=5 // pred_check
        _
      $region10: #{tpu_custom_call.1} parent=5 // pred_check_branch
        %188 = sbr.rel (%p185) target = $region12
      $region11: #{tpu_custom_call.1} parent=5 // pred_region
        %s189 = ssub.s32 %s20, 1
        // Predicated region
        $region13: #{tpu_custom_call.1} parent=11 // pred_check
          %p190 = pneg %p107
        $region14: #{tpu_custom_call.1} parent=11 // pred_check_branch
          %192 = sbr.rel (%p190) target = $region16
        $region15: #{tpu_custom_call.1} parent=11 // pred_region
          _
        $region16: #{tpu_custom_call.1} parent=11 // pred_fallthru
          _
        // Predicated region
        $region17: #{tpu_custom_call.1} parent=11 // pred_check
          %p193 = pneg %p128
        $region18: #{tpu_custom_call.1} parent=11 // pred_check_branch
          %195 = sbr.rel (%p193) target = $region20
        $region19: #{tpu_custom_call.1} parent=11 // pred_region
          _
        $region20: #{tpu_custom_call.1} parent=11 // pred_fallthru
          _
        // Predicated region
        $region21: #{tpu_custom_call.1} parent=11 // pred_check
          %p196 = pneg %p149
        $region22: #{tpu_custom_call.1} parent=11 // pred_check_branch
          %198 = sbr.rel (%p196) target = $region24
        $region23: #{tpu_custom_call.1} parent=11 // pred_region
          _
        $region24: #{tpu_custom_call.1} parent=11 // pred_fallthru
          _
      $region12: #{tpu_custom_call.1} parent=5 // pred_fallthru
        _
      %p199 = scmp.lt.s32.totalorder %s20, 4
      // Predicated region
      $region25: #{tpu_custom_call.1} parent=5 // pred_check
        %p200 = pneg %p199
      $region26: #{tpu_custom_call.1} parent=5 // pred_check_branch
        %202 = sbr.rel (%p200) target = $region28
      $region27: #{tpu_custom_call.1} parent=5 // pred_region
        // Predicated region
        $region29: #{tpu_custom_call.1} parent=27 // pred_check
          %p203 = pneg %p54
        $region30: #{tpu_custom_call.1} parent=27 // pred_check_branch
          %205 = sbr.rel (%p203) target = $region32
        $region31: #{tpu_custom_call.1} parent=27 // pred_region
          %s206 = sand.u32 %s44, 1
          %s207 = scalar_lea.sflag [#allocation5], %s206
          %s208 = sand.u32 %s44, 1
          %s209 = smul.addr %s208, 16
          %s210 = scalar_lea.vmem [#allocation4], %s209
          %s211 = smul.u32 2, %s27
          %s212 = smul.u32 2, %s28
          %214 = vsyncadd %s207, 0
          %s215 = smul.addr %s211, 8
          %s216 = sadd.s32 %s212, %s215
          %s217 = smul.addr %s216, 4
          %s218 = scalar_lea.hbm %s0, %s217
          %s219 = sshll.u32 %s218, 4
          %s220 = int_to_ptr.hbm [resolvable:$true] %s219
          %s221 = sshll.u32 %s210, 4
          %s222 = int_to_ptr.vmem [resolvable:$true] %s221
          %227 = dma.hbm_to_vmem [thread:$0]  %s220, 256, %s222, %s207, 512, 128, 8
        $region32: #{tpu_custom_call.1} parent=27 // pred_fallthru
          _
        // Predicated region
        $region33: #{tpu_custom_call.1} parent=27 // pred_check
          %p228 = pneg %p80
        $region34: #{tpu_custom_call.1} parent=27 // pred_check_branch
          %230 = sbr.rel (%p228) target = $region36
        $region35: #{tpu_custom_call.1} parent=27 // pred_region
          %s231 = sand.u32 %s70, 1
          %s232 = scalar_lea.sflag [#allocation8], %s231
          %s233 = sand.u32 %s70, 1
          %s234 = smul.addr %s233, 128
          %s235 = scalar_lea.vmem [#allocation7], %s234
          %s236 = smul.u32 32, %s28
          %238 = vsyncadd %s232, 0
          %s239 = smul.addr %s236, 4
          %s240 = scalar_lea.hbm %s1, %s239
          %s241 = sshll.u32 %s240, 4
          %s242 = int_to_ptr.hbm [resolvable:$true] %s241
          %s243 = sshll.u32 %s235, 4
          %s244 = int_to_ptr.vmem [resolvable:$true] %s243
          %249 = dma.hbm_to_vmem [thread:$0]  %s242, 2048, %s244, %s232, 64, 64, 4
        $region36: #{tpu_custom_call.1} parent=27 // pred_fallthru
          _
      $region28: #{tpu_custom_call.1} parent=5 // pred_fallthru
        _
      %p250 = scmp.le.s32.totalorder 1, %s20
      %p251 = scmp.lt.s32.totalorder %s20, 5
      %p252 = pnand %p250, %p251
      %p253 = pneg %p252
      // Predicated region
      $region37: #{tpu_custom_call.1} parent=5 // pred_check
        _
      $region38: #{tpu_custom_call.1} parent=5 // pred_check_branch
        %255 = sbr.rel (%p252) target = $region40
      $region39: #{tpu_custom_call.1} parent=5 // pred_region
        %s256 = ssub.s32 %s20, 1
        %s257 = sand.u32 %s47, 1
        %s258 = scalar_lea.sflag [#allocation5], %s257
        %s259 = sand.u32 %s47, 1
        %s260 = smul.addr %s259, 16
        %s261 = scalar_lea.vmem [#allocation4], %s260
        // Predicated region
        $region41: #{tpu_custom_call.1} parent=39 // pred_check
          %p262 = pneg %p60
        $region42: #{tpu_custom_call.1} parent=39 // pred_check_branch
          %264 = sbr.rel (%p262) target = $region44
        $region43: #{tpu_custom_call.1} parent=39 // pred_region
          %266 = dma.done %s258, 256
        $region44: #{tpu_custom_call.1} parent=39 // pred_fallthru
          _
        %s267 = sand.u32 %s73, 1
        %s268 = scalar_lea.sflag [#allocation8], %s267
        %s269 = sand.u32 %s73, 1
        %s270 = smul.addr %s269, 128
        %s271 = scalar_lea.vmem [#allocation7], %s270
        // Predicated region
        $region45: #{tpu_custom_call.1} parent=39 // pred_check
          %p272 = pneg %p86
        $region46: #{tpu_custom_call.1} parent=39 // pred_check_branch
          %274 = sbr.rel (%p272) target = $region48
        $region47: #{tpu_custom_call.1} parent=39 // pred_region
          %276 = dma.done %s268, 2048
        $region48: #{tpu_custom_call.1} parent=39 // pred_fallthru
          _
        %s277 = sand.u32 %s47, 1
        %s278 = scalar_lea.sflag [#allocation5], %s277
        %s279 = sand.u32 %s47, 1
        %s280 = smul.addr %s279, 16
        %s281 = scalar_lea.vmem [#allocation4], %s280
        %p282 = pneg %p60
        %p283 = pneg %p57
        %s284 = sand.u32 %s73, 1
        %s285 = scalar_lea.sflag [#allocation8], %s284
        %s286 = sand.u32 %s73, 1
        %s287 = smul.addr %s286, 128
        %s288 = scalar_lea.vmem [#allocation7], %s287
        %p289 = pneg %p86
        %p290 = pneg %p83
        %p291 = pneg %p107
        %p292 = pneg %p104
        %p293 = pneg %p128
        %p294 = pneg %p125
        %p295 = pneg %p149
        %p296 = pneg %p146
        %p297 = pneg %p175
        %p298 = pneg %p172
        %s299 = smul.u32 2, %s29
        %s300 = smul.u32 2, %s30
        %s301 = smul.u32 32, %s30
        %s302 = smul.u32 2, %s29
        %p303 = scmp.eq.s32.totalorder %s30, 0
        // Predicated region
        $region49: #{tpu_custom_call.1} parent=39 // pred_check
          %p304 = pneg %p303
        $region50: #{tpu_custom_call.1} parent=39 // pred_check_branch
          %306 = sbr.rel (%p304) target = $region52
        $region51: #{tpu_custom_call.1} parent=39 // pred_region
          %307 = vst [vmem:[#allocation2] sm:$0xff] 0.0
          %308 = vst [vmem:[#allocation2 + $0x8] sm:$0xff] 0.0
        $region52: #{tpu_custom_call.1} parent=39 // pred_fallthru
          _
        %v309 = vld [vmem:[#allocation2] sm:$0xff]
        %v310 = vld [vmem:[#allocation2 + $0x8] sm:$0xff]
        %v311 = vld [vmem:[%s261] sm:$0xff]
        %v312 = vld [vmem:[%s261 + $0x8] sm:$0xff]
        %v313 = vld [vmem:[%s271] sm:$0xf]
        %v314 = vld [vmem:[%s271 + $0x4] sm:$0xf]
        %v315 = vld [vmem:[%s271 + $0x8] sm:$0xf]
        %v316 = vld [vmem:[%s271 + $0xc] sm:$0xf]
        %v317 = vld [vmem:[%s271 + $0x10] sm:$0xf]
        %v318 = vld [vmem:[%s271 + $0x14] sm:$0xf]
        %v319 = vld [vmem:[%s271 + $0x18] sm:$0xf]
        %v320 = vld [vmem:[%s271 + $0x1c] sm:$0xf]
        %v321 = vld [vmem:[%s271 + $0x20] sm:$0xf]
        %v322 = vld [vmem:[%s271 + $0x24] sm:$0xf]
        %v323 = vld [vmem:[%s271 + $0x28] sm:$0xf]
        %v324 = vld [vmem:[%s271 + $0x2c] sm:$0xf]
        %v325 = vld [vmem:[%s271 + $0x30] sm:$0xf]
        %v326 = vld [vmem:[%s271 + $0x34] sm:$0xf]
        %v327 = vld [vmem:[%s271 + $0x38] sm:$0xf]
        %v328 = vld [vmem:[%s271 + $0x3c] sm:$0xf]
        %v329 = vld [vmem:[%s271 + $0x40] sm:$0xf]
        %v330 = vld [vmem:[%s271 + $0x44] sm:$0xf]
        %v331 = vld [vmem:[%s271 + $0x48] sm:$0xf]
        %v332 = vld [vmem:[%s271 + $0x4c] sm:$0xf]
        %v333 = vld [vmem:[%s271 + $0x50] sm:$0xf]
        %v334 = vld [vmem:[%s271 + $0x54] sm:$0xf]
        %v335 = vld [vmem:[%s271 + $0x58] sm:$0xf]
        %v336 = vld [vmem:[%s271 + $0x5c] sm:$0xf]
        %v337 = vld [vmem:[%s271 + $0x60] sm:$0xf]
        %v338 = vld [vmem:[%s271 + $0x64] sm:$0xf]
        %v339 = vld [vmem:[%s271 + $0x68] sm:$0xf]
        %v340 = vld [vmem:[%s271 + $0x6c] sm:$0xf]
        %v341 = vld [vmem:[%s271 + $0x70] sm:$0xf]
        %v342 = vld [vmem:[%s271 + $0x74] sm:$0xf]
        %v343 = vld [vmem:[%s271 + $0x78] sm:$0xf]
        %v344 = vld [vmem:[%s271 + $0x7c] sm:$0xf]
        %v347 = vunpack.c.l.b16 %v311
        %v348 = vunpack.c.h.b16 %v311
        %v349 = vunpack.c.l.b16 %v312
        %v350 = vunpack.c.h.b16 %v312
        %v351 = vpack.c.b16 %v349, %v347
        %v352 = vpack.c.b16 %v350, %v348
        %v387 = vunpack.c.l.b16 %v313
        %v388 = vunpack.c.l.b16 %v314
        %v389 = vunpack.c.l.b16 %v315
        %v390 = vunpack.c.l.b16 %v316
        %v391 = vunpack.c.l.b16 %v317
        %v392 = vunpack.c.l.b16 %v318
        %v393 = vunpack.c.l.b16 %v319
        %v394 = vunpack.c.l.b16 %v320
        %v395 = vunpack.c.l.b16 %v321
        %v396 = vunpack.c.l.b16 %v322
        %v397 = vunpack.c.l.b16 %v323
        %v398 = vunpack.c.l.b16 %v324
        %v399 = vunpack.c.l.b16 %v325
        %v400 = vunpack.c.l.b16 %v326
        %v401 = vunpack.c.l.b16 %v327
        %v402 = vunpack.c.l.b16 %v328
        %v403 = vunpack.c.l.b16 %v329
        %v404 = vunpack.c.l.b16 %v330
        %v405 = vunpack.c.l.b16 %v331
        %v406 = vunpack.c.l.b16 %v332
        %v407 = vunpack.c.l.b16 %v333
        %v408 = vunpack.c.l.b16 %v334
        %v409 = vunpack.c.l.b16 %v335
        %v410 = vunpack.c.l.b16 %v336
        %v411 = vunpack.c.l.b16 %v337
        %v412 = vunpack.c.l.b16 %v338
        %v413 = vunpack.c.l.b16 %v339
        %v414 = vunpack.c.l.b16 %v340
        %v415 = vunpack.c.l.b16 %v341
        %v416 = vunpack.c.l.b16 %v342
        %v417 = vunpack.c.l.b16 %v343
        %v418 = vunpack.c.l.b16 %v344
        %v419 = vpack.c.b16 %v388, %v387
        %v420 = vpack.c.b16 %v390, %v389
        %v421 = vpack.c.b16 %v392, %v391
        %v422 = vpack.c.b16 %v394, %v393
        %v423 = vpack.c.b16 %v396, %v395
        %v424 = vpack.c.b16 %v398, %v397
        %v425 = vpack.c.b16 %v400, %v399
        %v426 = vpack.c.b16 %v402, %v401
        %v427 = vpack.c.b16 %v404, %v403
        %v428 = vpack.c.b16 %v406, %v405
        %v429 = vpack.c.b16 %v408, %v407
        %v430 = vpack.c.b16 %v410, %v409
        %v431 = vpack.c.b16 %v412, %v411
        %v432 = vpack.c.b16 %v414, %v413
        %v433 = vpack.c.b16 %v416, %v415
        %v434 = vpack.c.b16 %v418, %v417
        %451 = vmatpush.bf16.msra.mxu0 %v426
        %452 = vmatpush.bf16.msra.mxu0 %v425
        %453 = vmatpush.bf16.msra.mxu0 %v424
        %454 = vmatpush.bf16.msra.mxu0 %v423
        %455 = vmatpush.bf16.msra.mxu0 %v422
        %456 = vmatpush.bf16.msra.mxu0 %v421
        %457 = vmatpush.bf16.msra.mxu0 %v420
        %458 = vmatpush.bf16.msra.mxu0 %v419
        %459 = vmatmul.bf16.gmra.mxu0 %v351
        %v460 = vpop.f32.mrf.mxu0
        %v461 = vadd.f32 0.0, %v460
        %v462 = vpop.f32.mrf.mxu0
        %v463 = vadd.f32 0.0, %v462
        %464 = vdwg.mxu0
        %465 = vmatpush.bf16.msra.mxu0 %v434
        %466 = vmatpush.bf16.msra.mxu0 %v433
        %467 = vmatpush.bf16.msra.mxu0 %v432
        %468 = vmatpush.bf16.msra.mxu0 %v431
        %469 = vmatpush.bf16.msra.mxu0 %v430
        %470 = vmatpush.bf16.msra.mxu0 %v429
        %471 = vmatpush.bf16.msra.mxu0 %v428
        %472 = vmatpush.bf16.msra.mxu0 %v427
        %473 = vmatmul.bf16.gmra.mxu0 %v352
        %v474 = vpop.f32.mrf.mxu0
        %v475 = vadd.f32 %v461, %v474
        %v476 = vpop.f32.mrf.mxu0
        %v477 = vadd.f32 %v463, %v476
        %478 = vdwg.mxu0
        %v479 = vadd.f32 %v309, %v475
        %v480 = vadd.f32 %v310, %v477
        %481 = vst [vmem:[#allocation2] sm:$0xff] %v479
        %482 = vst [vmem:[#allocation2 + $0x8] sm:$0xff] %v480
        %p483 = scmp.eq.s32.totalorder %s30, 3
        // Predicated region
        $region53: #{tpu_custom_call.1} parent=39 // pred_check
          %p484 = pneg %p483
        $region54: #{tpu_custom_call.1} parent=39 // pred_check_branch
          %486 = sbr.rel (%p484) target = $region56
        $region55: #{tpu_custom_call.1} parent=39 // pred_region
          %v487 = vld [vmem:[#allocation2] sm:$0xff]
          %v488 = vld [vmem:[#allocation2 + $0x8] sm:$0xff]
          %v489 = vld [vmem:[%s2] sm:$0x1]
          %v491 = vperm.slane %v489, 0
          %v493 = vadd.f32 %v487, %v491
          %v494 = vadd.f32 %v488, %v491
          %v495 = vmax.f32 %v493, 0.0
          %v496 = vmax.f32 %v494, 0.0
          %v497 = vld [vmem:[%s3] sm:$0x1]
          %v499 = vperm.slane %v497, 0
          %v501 = vmul.f32 %v495, %v499
          %v502 = vmul.f32 %v496, %v499
          %503 = vadd.xlane.f32.xlu0 %v501
          %v504 = vpop.xlane.xlu0 %503
          %505 = vadd.xlane.f32.xlu0 %v502
          %v506 = vpop.xlane.xlu0 %505
          %v507 = vld [vmem:[#allocation3] sm:$0x1]
          %v509 = vperm.slane %v507, 0
          %v511 = vadd.f32 %v504, %v509
          %v512 = vadd.f32 %v506, %v509
          %514 = vset.pattern.permute.xlu0 0
          %515 = vperm.xlu0 %514, %v511
          %v516 = vpop.permute.xlu0 %515
          %519 = vset.pattern.permute.xlu0 0
          %520 = vperm.xlu0 %519, %v512
          %v521 = vpop.permute.xlu0 %520
          %523 = vst [vmem:[#allocation9] sm:$0xff] %v516
          %524 = vst [vmem:[#allocation9 + $0x8] sm:$0xff] %v521
        $region56: #{tpu_custom_call.1} parent=39 // pred_fallthru
          _
        // Predicated region
        $region57: #{tpu_custom_call.1} parent=39 // pred_check
          %p525 = pneg %p172
        $region58: #{tpu_custom_call.1} parent=39 // pred_check_branch
          %527 = sbr.rel (%p525) target = $region60
        $region59: #{tpu_custom_call.1} parent=39 // pred_region
          %s528 = smul.u32 2, %s29
          %530 = vsyncadd [#allocation6], 0
          %s531 = smul.addr %s528, 8
          %s532 = scalar_lea.hbm %s5, %s531
          %s533 = sshll.u32 [#allocation9], 4
          %s534 = int_to_ptr.vmem [resolvable:$true] %s533
          %s535 = sshll.u32 %s532, 4
          %s536 = int_to_ptr.hbm [resolvable:$true] %s535
          %541 = dma.vmem_to_hbm [thread:$0]  %s534, 256, %s536, [#allocation6], 128, 128, 8
        $region60: #{tpu_custom_call.1} parent=39 // pred_fallthru
          _
        // Predicated region
        $region61: #{tpu_custom_call.1} parent=39 // pred_check
          %p542 = pneg %p172
        $region62: #{tpu_custom_call.1} parent=39 // pred_check_branch
          %544 = sbr.rel (%p542) target = $region64
        $region63: #{tpu_custom_call.1} parent=39 // pred_region
          %546 = dma.done [#allocation6], 256
        $region64: #{tpu_custom_call.1} parent=39 // pred_fallthru
          _
      $region40: #{tpu_custom_call.1} parent=5 // pred_fallthru
        _
      %p547 = scmp.le.s32.totalorder 2, %s20
      // Predicated region
      $region65: #{tpu_custom_call.1} parent=5 // pred_check
        %p548 = pneg %p547
      $region66: #{tpu_custom_call.1} parent=5 // pred_check_branch
        %550 = sbr.rel (%p548) target = $region68
      $region67: #{tpu_custom_call.1} parent=5 // pred_region
        %s551 = ssub.s32 %s20, 2
      $region68: #{tpu_custom_call.1} parent=5 // pred_fallthru
        _
    $region6: #{tpu_custom_call.1} parent=1 // loop_footer
      %s24 = sadd.s32 1, %s20
    $region7: #{tpu_custom_call.1} parent=1 // loop_footer_branch
      %19 = sbr.rel target = $region3
    $region8: #{tpu_custom_call.1} parent=1 // loop_exit
      _
    %552 = vsyncpa [#allocation5], 1
    %s553 = scalar_lea.sflag [#allocation5], 1
    %554 = vsyncpa %s553, 1
    %555 = vsyncpa [#allocation8], 1
    %s556 = scalar_lea.sflag [#allocation8], 1
    %557 = vsyncpa %s556, 1
    %558 = vsyncpa [#allocation6], 1
    %s559 = scalar_lea.sflag [#allocation6], 1
    %560 = vsyncpa %s559, 1

</llo_original>
